<compile_context>
chip_gen: v6e
topology: v6e:2x2x1
jax: 0.10.0
libtpu: 0.0.40
codegen_flags: <defaults>
</compile_context>

<pallas_src>
import numpy as np
import jax
import jax.numpy as jnp
from jax import lax
from jax.experimental import pallas as pl
from jax.experimental.pallas import tpu as pltpu


# ----------------------------------------------------------------------------
# Pallas kernel: one (batch, pixel-tile) grid step of the affine bilinear warp.
# All tile-sized intermediates keep TQ on the lane axis.
# ----------------------------------------------------------------------------
def _tcr_warp_kernel(coords_ref, img_ref, out_ref):
    # coords_ref: (2, TQ)  f32   row 0 = sx (width coord), row 1 = sy (height coord)
    # img_ref   : (C*Ws, Hs)     channel-fused source image:  img_ref[c*Ws + w, h] = img[c, h, w]
    # out_ref   : (C, TQ)  f32   lane-dense warped output tile
    CW, Hs = img_ref.shape
    C, TQ = out_ref.shape
    Ws = CW // C

    sx = coords_ref[0:1, :]  # (1, TQ)
    sy = coords_ref[1:2, :]  # (1, TQ)

    # Bilinear tent weights vs. every source row / column (TQ on the lane axis).
    # Out-of-range samples get zero weight -> padding_mode='zeros'.
    r_idx = lax.broadcasted_iota(jnp.int32, (Hs, TQ), 0).astype(jnp.float32)
    c_idx = lax.broadcasted_iota(jnp.int32, (Ws, TQ), 0).astype(jnp.float32)
    Wy = jnp.maximum(0.0, 1.0 - jnp.abs(sy - r_idx))  # (Hs, TQ)
    Wx = jnp.maximum(0.0, 1.0 - jnp.abs(sx - c_idx))  # (Ws, TQ)

    # Single channel-fused MXU matmul with N = TQ (lane-dense result, f32 accumulate).
    if img_ref.dtype == jnp.bfloat16:
        tmp = jnp.dot(img_ref[...], Wy.astype(jnp.bfloat16),
                      preferred_element_type=jnp.float32)           # (C*Ws, TQ)
    else:
        tmp = jnp.dot(img_ref[...], Wy, preferred_element_type=jnp.float32)

    # Epilogue: weight by Wx over the C sublane segments and reduce the Ws axis.
    prod = tmp.reshape(C, Ws, TQ) * Wx[None, :, :]                   # (C, Ws, TQ)
    out_ref[...] = jnp.sum(prod, axis=1).astype(out_ref.dtype)       # (C, TQ) single store


# ----------------------------------------------------------------------------
# Glue: forward 2x3 affine (exact PyTorch formulas, incl. its W=shape[2]/H=shape[3]
# convention) and its inverse (warp_affine pulls from src with T^{-1}).
# ----------------------------------------------------------------------------
def _tcr_inverse_affine_params(img_shape, random):
    bs, _, dim2, dim3 = img_shape
    W = jnp.float32(dim2)  # matches PyTorch: W = img.shape[2]
    H = jnp.float32(dim3)  # matches PyTorch: H = img.shape[3]

    ang = jnp.float32(np.deg2rad(20.0))
    ang_neg = -ang
    max_tx, max_ty, min_tx, min_ty = 6.0, 6.0, -6.0, -6.0
    max_z, min_z = 1.0, 1.0

    rnd = random.astype(jnp.float32)
    tx = (max_tx - min_tx) * rnd + min_tx
    ty = (max_ty - min_ty) * rnd + min_ty
    r = (ang - ang_neg) * rnd + ang_neg
    z = (max_z - min_z) * rnd + min_z
    hx = (ang - ang_neg) * rnd + ang_neg
    hy = (ang - ang_neg) * rnd + ang_neg
    a = hx - r
    b = hy + r

    T11 = z * jnp.cos(a) / jnp.cos(hx)
    T12 = z * jnp.sin(a) / jnp.cos(hx)
    T13 = (W * jnp.cos(hx) - W * z * jnp.cos(a) + 2 * tx * z * jnp.cos(a)
           - H * z * jnp.sin(a) + 2 * ty * z * jnp.sin(a)) / (2 * jnp.cos(hx))
    T21 = z * jnp.sin(b) / jnp.cos(hy)
    T22 = z * jnp.cos(b) / jnp.cos(hy)
    T23 = (H * jnp.cos(hy) - W * z * jnp.cos(b) + 2 * ty * z * jnp.cos(b)
           - W * z * jnp.sin(b) + 2 * tx * z * jnp.sin(b)) / (2 * jnp.cos(hy))

    det = T11 * T22 - T12 * T21
    i11 = T22 / det
    i12 = -T12 / det
    i13 = (T12 * T23 - T13 * T22) / det
    i21 = -T21 / det
    i22 = T11 / det
    i23 = (T13 * T21 - T11 * T23) / det

    return jnp.stack([i11, i12, i13, i21, i22, i23], axis=1).astype(jnp.float32)  # (bs, 6)


def _tcr_source_coords(img_shape, params):
    """Per-batch source sample coords for every dst pixel, row-major flattened: (bs, 2, P)."""
    bs, _, Hs, Ws = img_shape
    yo, xo = jnp.meshgrid(jnp.arange(Hs, dtype=jnp.float32),
                          jnp.arange(Ws, dtype=jnp.float32), indexing="ij")
    xo = xo.reshape(-1)  # (P,)
    yo = yo.reshape(-1)  # (P,)
    i11, i12, i13 = params[:, 0:1], params[:, 1:2], params[:, 2:3]
    i21, i22, i23 = params[:, 3:4], params[:, 4:5], params[:, 5:6]
    sx = i11 * xo[None, :] + i12 * yo[None, :] + i13  # (bs, P)
    sy = i21 * xo[None, :] + i22 * yo[None, :] + i23  # (bs, P)
    return jnp.stack([sx, sy], axis=1)  # (bs, 2, P)


def _pick_pixel_tile(P, Hs, Ws, C, vmem_budget_bytes=24 * 1024 * 1024, max_tile=2048):
    """VMEM-budgeted pixel-tile size: multiple of 128, capped by the (padded) problem size."""
    per_q_bytes = 4 * (Hs + Ws + 2 * C * Ws + 2 * C + 8)      # Wy, Wx, tmp, prod, out x2, coords x2
    fixed_bytes = 2 * 4 * C * Ws * Hs + (1 << 20)             # double-buffered fused image + slack
    budget = max(vmem_budget_bytes - fixed_bytes, 1 << 19)
    tq = int(budget // per_q_bytes)
    tq = max(128, (min(tq, max_tile) // 128) * 128)
    p_pad_min = -(-P // 128) * 128
    return min(tq, p_pad_min)


# ----------------------------------------------------------------------------
# Wrapper: TCR.forward equivalent.
# ----------------------------------------------------------------------------
def tcr_forward(img, random, *, use_bf16_matmul=False):
    img = img.astype(jnp.float32)
    bs, C, Hs, Ws = img.shape
    P = Hs * Ws

    TQ = _pick_pixel_tile(P, Hs, Ws, C)
    P_pad = -(-P // TQ) * TQ
    n_tiles = P_pad // TQ

    params = _tcr_inverse_affine_params(img.shape, random)    # (bs, 6)
    coords = _tcr_source_coords(img.shape, params)            # (bs, 2, P)
    if P_pad != P:
        # Pad with an out-of-range coordinate -> zero weights -> padded outputs are 0.
        coords = jnp.pad(coords, ((0, 0), (0, 0), (0, P_pad - P)), constant_values=-2.0)

    # Channel-fused image with source rows on the MXU K axis: img_fused[b, c*Ws + w, h].
    img_fused = img.transpose(0, 1, 3, 2).reshape(bs, C * Ws, Hs)
    if use_bf16_matmul:
        img_fused = img_fused.astype(jnp.bfloat16)

    flops = (2 * bs * C * Ws * Hs * P_pad          # MXU contraction
             + 3 * bs * P_pad * (Hs + Ws)          # tent weights
             + 2 * bs * C * Ws * P_pad)            # epilogue
    bytes_accessed = 4 * (bs * C * Hs * Ws + bs * 2 * P_pad + bs * C * P_pad)

    # v7x megacore: shard on batch (one resident image per core); tile axis sequential.
    dim_sem = ("parallel", "arbitrary") if bs >= 2 else ("parallel", "parallel")

    out_flat = pl.pallas_call(
        _tcr_warp_kernel,
        grid=(bs, n_tiles),
        in_specs=[
            pl.BlockSpec((None, 2, TQ), lambda b, t: (b, 0, t)),         # coords tile (lane-dense)
            pl.BlockSpec((None, C * Ws, Hs), lambda b, t: (b, 0, 0)),    # fused image, resident per batch
        ],
        out_specs=pl.BlockSpec((None, C, TQ), lambda b, t: (b, 0, t)),   # lane-dense output tile
        out_shape=jax.ShapeDtypeStruct((bs, C, P_pad), jnp.float32),
        compiler_params=pltpu.CompilerParams(
            dimension_semantics=dim_sem,
            vmem_limit_bytes=32 * 1024 * 1024,
        ),
        cost_estimate=pl.CostEstimate(
            flops=flops, transcendentals=0, bytes_accessed=bytes_accessed),
    )(coords, img_fused)

    return out_flat[:, :, :P].reshape(bs, C, Hs, Ws)


tcr_forward_jit = jax.jit(tcr_forward, static_argnames=("use_bf16_matmul",))


# ----------------------------------------------------------------------------
# Pure-JAX reference (explicit 4-tap bilinear gather) for a correctness check.
# ----------------------------------------------------------------------------
def tcr_reference(img, random):
    img = img.astype(jnp.float32)
    bs, C, Hs, Ws = img.shape
    params = _tcr_inverse_affine_params(img.shape, random)

    yo, xo = jnp.meshgrid(jnp.arange(Hs, dtype=jnp.float32),
                          jnp.arange(Ws, dtype=jnp.float32), indexing="ij")

    def one(im, p):
        a11, a12, a13, a21, a22, a23 = p[0], p[1], p[2], p[3], p[4], p[5]
        sx = a11 * xo + a12 * yo + a13
        sy = a21 * xo + a22 * yo + a23
        x0 = jnp.floor(sx)
        y0 = jnp.floor(sy)
        x1 = x0 + 1.0
        y1 = y0 + 1.0
        wx1 = sx - x0
        wx0 = 1.0 - wx1
        wy1 = sy - y0
        wy0 = 1.0 - wy1

        def tap(yi, xi, w):
            valid = (yi >= 0) & (yi < Hs) & (xi >= 0) & (xi < Ws)
            yc = jnp.clip(yi, 0, Hs - 1).astype(jnp.int32)
            xc = jnp.clip(xi, 0, Ws - 1).astype(jnp.int32)
            return im[:, yc, xc] * (w * valid.astype(jnp.float32))[None]

        return (tap(y0, x0, wy0 * wx0) + tap(y0, x1, wy0 * wx1)
                + tap(y1, x0, wy1 * wx0) + tap(y1, x1, wy1 * wx1))

    return jax.vmap(one)(img, params)


if __name__ == "__main__":
    key = jax.random.PRNGKey(0)
    k_img, k_rnd, k_img2, k_rnd2, k_img3, k_rnd3 = jax.random.split(key, 6)

    # Primary small shape: (bs, C, H, W) = (2, 4, 16, 16)  -> single 256-pixel tile.
    img = jax.random.uniform(k_img, (2, 4, 16, 16), dtype=jnp.float32)   # NCHW
    random = jax.random.uniform(k_rnd, (2,), dtype=jnp.float32)          # one scalar per batch elt
    out = jax.block_until_ready(tcr_forward_jit(img, random))
    ref = tcr_reference(img, random)
    assert out.shape == img.shape, (out.shape, img.shape)
    assert jnp.allclose(out, ref, atol=1e-4, rtol=1e-4), float(jnp.max(jnp.abs(out - ref)))

    # Rectangular shape (P = 2048) exercising the lane-dense 2048-wide tile.
    img2 = jax.random.uniform(k_img2, (2, 3, 32, 64), dtype=jnp.float32)
    random2 = jax.random.uniform(k_rnd2, (2,), dtype=jnp.float32)
    out2 = jax.block_until_ready(tcr_forward_jit(img2, random2))
    ref2 = tcr_reference(img2, random2)
    assert out2.shape == img2.shape, (out2.shape, img2.shape)
    assert jnp.allclose(out2, ref2, atol=1e-4, rtol=1e-4), float(jnp.max(jnp.abs(out2 - ref2)))

    # Non-128-divisible pixel count (P = 576) exercising the padded-tile path.
    img3 = jax.random.uniform(k_img3, (1, 3, 24, 24), dtype=jnp.float32)
    random3 = jax.random.uniform(k_rnd3, (1,), dtype=jnp.float32)
    out3 = jax.block_until_ready(tcr_forward_jit(img3, random3))
    ref3 = tcr_reference(img3, random3)
    assert out3.shape == img3.shape, (out3.shape, img3.shape)
    assert jnp.allclose(out3, ref3, atol=1e-4, rtol=1e-4), float(jnp.max(jnp.abs(out3 - ref3)))

    print("KERNEL_OK")
</pallas_src>

<mosaic_0001>
module attributes {stable_mosaic.version = 11 : i64} {
  func.func @_tcr_warp_kernel(%arg0: i32, %arg1: i32, %arg2: memref<1x2x256xf32, #tpu.memory_space<vmem>>, %arg3: memref<1x64x16xf32, #tpu.memory_space<vmem>>, %arg4: memref<1x4x256xf32, #tpu.memory_space<vmem>>) attributes {dimension_semantics = [#tpu.dimension_semantics<parallel>, #tpu.dimension_semantics<arbitrary>], iteration_bounds = array<i64: 2, 1>, scalar_prefetch = 0 : i64, scratch_operands = 0 : i64, tpu.core_type = #tpu.core_type<tc>, window_params = [{transform_indices = @transform_0, window_bounds = array<i64: 1, 2, 256>}, {transform_indices = @transform_1, window_bounds = array<i64: 1, 64, 16>}, {transform_indices = @transform_2, window_bounds = array<i64: 1, 4, 256>}]} {
    %c0 = arith.constant 0 : index
    %c0_0 = arith.constant 0 : index
    %c0_1 = arith.constant 0 : index
    %0 = vector.load %arg2[%c0, %c0_0, %c0_1] : memref<1x2x256xf32, #tpu.memory_space<vmem>>, vector<1x1x256xf32>
    %1 = vector.shape_cast %0 : vector<1x1x256xf32> to vector<1x256xf32>
    %c0_2 = arith.constant 0 : index
    %c1 = arith.constant 1 : index
    %c0_3 = arith.constant 0 : index
    %2 = vector.load %arg2[%c0_2, %c1, %c0_3] : memref<1x2x256xf32, #tpu.memory_space<vmem>>, vector<1x1x256xf32>
    %3 = vector.shape_cast %2 : vector<1x1x256xf32> to vector<1x256xf32>
    %4 = tpu.iota {dimensions = array<i32: 0>} : vector<16x256xi32>
    %5 = arith.sitofp %4 : vector<16x256xi32> to vector<16x256xf32>
    %6 = tpu.iota {dimensions = array<i32: 0>} : vector<16x256xi32>
    %7 = arith.sitofp %6 : vector<16x256xi32> to vector<16x256xf32>
    %8 = vector.broadcast %3 : vector<1x256xf32> to vector<16x256xf32>
    %9 = arith.subf %8, %5 : vector<16x256xf32>
    %10 = math.absf %9 : vector<16x256xf32>
    %cst = arith.constant 1.000000e+00 : f32
    %11 = vector.broadcast %cst : f32 to vector<16x256xf32>
    %12 = arith.subf %11, %10 : vector<16x256xf32>
    %cst_4 = arith.constant 0.000000e+00 : f32
    %13 = vector.broadcast %cst_4 : f32 to vector<16x256xf32>
    %14 = arith.maximumf %13, %12 : vector<16x256xf32>
    %15 = vector.broadcast %1 : vector<1x256xf32> to vector<16x256xf32>
    %16 = arith.subf %15, %7 : vector<16x256xf32>
    %17 = math.absf %16 : vector<16x256xf32>
    %cst_5 = arith.constant 1.000000e+00 : f32
    %18 = vector.broadcast %cst_5 : f32 to vector<16x256xf32>
    %19 = arith.subf %18, %17 : vector<16x256xf32>
    %cst_6 = arith.constant 0.000000e+00 : f32
    %20 = vector.broadcast %cst_6 : f32 to vector<16x256xf32>
    %21 = arith.maximumf %20, %19 : vector<16x256xf32>
    %c0_7 = arith.constant 0 : index
    %c0_8 = arith.constant 0 : index
    %c0_9 = arith.constant 0 : index
    %22 = vector.load %arg3[%c0_7, %c0_8, %c0_9] : memref<1x64x16xf32, #tpu.memory_space<vmem>>, vector<1x64x16xf32>
    %23 = vector.shape_cast %22 : vector<1x64x16xf32> to vector<64x16xf32>
    %cst_10 = arith.constant dense<0.000000e+00> : vector<64x256xf32>
    %24 = tpu.matmul %23, %14, %cst_10 {dimension_numbers = #tpu.dot_dimension_numbers<[1], [0], [0], [1], [0, 0, 1, 1], [], []>} : vector<64x16xf32>, vector<16x256xf32>, vector<64x256xf32> -> vector<64x256xf32>
    %25 = vector.shape_cast %24 : vector<64x256xf32> to vector<4x16x256xf32>
    %26 = vector.shape_cast %21 : vector<16x256xf32> to vector<1x16x256xf32>
    %27 = vector.broadcast %26 : vector<1x16x256xf32> to vector<4x16x256xf32>
    %28 = arith.mulf %25, %27 : vector<4x16x256xf32>
    %cst_11 = arith.constant dense<0.000000e+00> : vector<4x256xf32>
    %29 = vector.multi_reduction <add>, %28, %cst_11 [1] : vector<4x16x256xf32> to vector<4x256xf32>
    %c0_12 = arith.constant 0 : index
    %c0_13 = arith.constant 0 : index
    %c0_14 = arith.constant 0 : index
    %30 = vector.load %arg4[%c0_12, %c0_13, %c0_14] : memref<1x4x256xf32, #tpu.memory_space<vmem>>, vector<1x4x256xf32>
    %31 = vector.shape_cast %30 : vector<1x4x256xf32> to vector<4x256xf32>
    %32 = vector.shape_cast %29 : vector<4x256xf32> to vector<1x4x256xf32>
    tpu.vector_store %arg4[%c0_12, %c0_13, %c0_14], %32 {strides = array<i32>} : memref<1x4x256xf32, #tpu.memory_space<vmem>>, vector<1x4x256xf32>,
    return
  }
  func.func @transform_0(%arg0: i32, %arg1: i32) -> (i32, i32, i32) {
    %c0_i32 = arith.constant 0 : i32
    %c0_i32_0 = arith.constant 0 : i32
    return %arg0, %c0_i32, %arg1 : i32, i32, i32
  }
  func.func @transform_1(%arg0: i32, %arg1: i32) -> (i32, i32, i32) {
    %c0_i32 = arith.constant 0 : i32
    %c0_i32_0 = arith.constant 0 : i32
    %c0_i32_1 = arith.constant 0 : i32
    return %arg0, %c0_i32, %c0_i32_0 : i32, i32, i32
  }
  func.func @transform_2(%arg0: i32, %arg1: i32) -> (i32, i32, i32) {
    %c0_i32 = arith.constant 0 : i32
    %c0_i32_0 = arith.constant 0 : i32
    return %arg0, %c0_i32, %arg1 : i32, i32, i32
  }
}

</mosaic_0001>

<llo_original>
// kernel: tcr_forward.1
$region0: #{tcr_forward.1}
  #allocation0 [shape = 'u32[]', space=smem, size = 0x4, offset = 0x4, fixed_abs, tag = 'smem constant byte address 0x4 - core index']
  #allocation1 [shape = 'u32[144,128]{1,0:T(1,128)}', space=vmem, size = 0x12000, scoped, tag = 'internal scratch']
  %s0 = inlined_call_operand.vmem [shape: f32[2,2,256], index: 0, kind: input, shape index: {}]
  %s1 = inlined_call_operand.vmem [shape: f32[2,64,16], index: 1, kind: input, shape index: {}]
  %s2 = inlined_call_operand.vmem [shape: f32[2,4,256], index: 2, kind: output, shape index: {}]
  %s3 = sld [smem:[#allocation0]]
  $region41: #{tcr_forward.1} parent=0
    _
  %s5 = ssub.s32 1, %s3
  %s6 = scalar_select 0, %s5, %s3
  loop: start=0, step=1, limit=4
  $region2: #{tcr_forward.1} parent=0 // loop_pre_header
    _
  $region3: #{tcr_forward.1} parent=0 // loop_header
    %s8 = sphi 0, %s12
    %p9 = scmp.ge.s32.totalorder %s8, 4
    %s15 = sphi 0, %s27
    %s16 = sphi 0, %s23
    %s17 = sphi 0, %s15
    %s18 = sphi 0, %s16
    %s19 = sphi 0, %s17
    %s20 = sphi 0, %s18
    %s32 = sphi 0, %s34
    %s35 = sphi 0, %s32
    %s36 = sphi 0, %s35
    %s52 = sphi 0, %s36
    %s58 = sphi 0, %s60
    %s61 = sphi 0, %s58
    %s62 = sphi 0, %s61
    %s78 = sphi 0, %s62
    %s86 = sphi 0, %s88
    %s89 = sphi 0, %s86
    %s90 = sphi 0, %s89
    %s106 = sphi 0, %s90
  $region4: #{tcr_forward.1} parent=0 // loop_header_branch
    %11 = sbr.rel (%p9) target = $region8
  $region5: #{tcr_forward.1} parent=0 // loop_body
    %s13 = ssub.s32 %s8, 1
    %s14 = ssub.s32 %s8, 2
    %s21 = sadd.s32 1, %s16
    %p22 = scmp.ge.s32.totalorder %s21, 1
    %s23 = scalar_select %p22, 0, %s21
    %s24 = sadd.s32 1, %s15
    %s25 = scalar_select %p22, %s24, %s15
    %p26 = scmp.ge.s32.totalorder %s25, 2
    %s27 = scalar_select %p26, 0, %s25
    %s28 = ssub.s32 %s15, %s27
    %s29 = ssub.s32 %s16, %s23
    %s30 = sor.u32 %s28, %s29
    %p31 = scmp.eq.s32.totalorder %s30, 0
    %s33 = sadd.s32 %s32, 1
    %s34 = scalar_select %p31, %s32, %s33
    %p37 = pneg %p31
    %p38 = scmp.eq.s32.totalorder %s8, 1
    %p39 = por %p37, %p38
    %p40 = scmp.ne.s32.totalorder %s32, %s35
    %p41 = scmp.eq.s32.totalorder %s8, 0
    %p42 = por %p40, %p41
    %p43 = scmp.ne.s32.totalorder %s32, %s35
    %p44 = scmp.eq.s32.totalorder %s13, 1
    %p45 = por %p43, %p44
    %p46 = scmp.ne.s32.totalorder %s35, %s36
    %p47 = scmp.eq.s32.totalorder %s13, 0
    %p48 = por %p46, %p47
    %p49 = scmp.ne.s32.totalorder %s35, %s36
    %p50 = scmp.eq.s32.totalorder %s14, 1
    %p51 = por %p49, %p50
    %p53 = scmp.ne.s32.totalorder %s36, %s52
    %p54 = scmp.eq.s32.totalorder %s14, 0
    %p55 = por %p53, %p54
    %s56 = ssub.s32 %s15, %s27
    %p57 = scmp.eq.s32.totalorder %s56, 0
    %s59 = sadd.s32 %s58, 1
    %s60 = scalar_select %p57, %s58, %s59
    %p63 = pneg %p57
    %p64 = scmp.eq.s32.totalorder %s8, 1
    %p65 = por %p63, %p64
    %p66 = scmp.ne.s32.totalorder %s58, %s61
    %p67 = scmp.eq.s32.totalorder %s8, 0
    %p68 = por %p66, %p67
    %p69 = scmp.ne.s32.totalorder %s58, %s61
    %p70 = scmp.eq.s32.totalorder %s13, 1
    %p71 = por %p69, %p70
    %p72 = scmp.ne.s32.totalorder %s61, %s62
    %p73 = scmp.eq.s32.totalorder %s13, 0
    %p74 = por %p72, %p73
    %p75 = scmp.ne.s32.totalorder %s61, %s62
    %p76 = scmp.eq.s32.totalorder %s14, 1
    %p77 = por %p75, %p76
    %p79 = scmp.ne.s32.totalorder %s62, %s78
    %p80 = scmp.eq.s32.totalorder %s14, 0
    %p81 = por %p79, %p80
    %s82 = ssub.s32 %s15, %s27
    %s83 = ssub.s32 %s16, %s23
    %s84 = sor.u32 %s82, %s83
    %p85 = scmp.eq.s32.totalorder %s84, 0
    %s87 = sadd.s32 %s86, 1
    %s88 = scalar_select %p85, %s86, %s87
    %p91 = pneg %p85
    %p92 = scmp.eq.s32.totalorder %s8, 1
    %p93 = por %p91, %p92
    %p94 = scmp.ne.s32.totalorder %s86, %s89
    %p95 = scmp.eq.s32.totalorder %s8, 0
    %p96 = por %p94, %p95
    %p97 = scmp.ne.s32.totalorder %s86, %s89
    %p98 = scmp.eq.s32.totalorder %s13, 1
    %p99 = por %p97, %p98
    %p100 = scmp.ne.s32.totalorder %s89, %s90
    %p101 = scmp.eq.s32.totalorder %s13, 0
    %p102 = por %p100, %p101
    %p103 = scmp.ne.s32.totalorder %s89, %s90
    %p104 = scmp.eq.s32.totalorder %s14, 1
    %p105 = por %p103, %p104
    %p107 = scmp.ne.s32.totalorder %s90, %s106
    %p108 = scmp.eq.s32.totalorder %s14, 0
    %p109 = por %p107, %p108
    %p110 = scmp.le.s32.totalorder 1, %s8
    %p111 = scmp.lt.s32.totalorder %s8, 3
    %p112 = pnand %p110, %p111
    %p113 = pneg %p112
    // Predicated region
    $region9: #{tcr_forward.1} parent=5 // pred_check
      _
    $region10: #{tcr_forward.1} parent=5 // pred_check_branch
      %115 = sbr.rel (%p112) target = $region12
    $region11: #{tcr_forward.1} parent=5 // pred_region
      %s116 = ssub.s32 %s8, 1
    $region12: #{tcr_forward.1} parent=5 // pred_fallthru
      _
    %p117 = scmp.lt.s32.totalorder %s8, 2
    // Predicated region
    $region13: #{tcr_forward.1} parent=5 // pred_check
      %p118 = pneg %p117
    $region14: #{tcr_forward.1} parent=5 // pred_check_branch
      %120 = sbr.rel (%p118) target = $region16
    $region15: #{tcr_forward.1} parent=5 // pred_region
      // Predicated region
      $region17: #{tcr_forward.1} parent=15 // pred_check
        %p121 = pneg %p42
      $region18: #{tcr_forward.1} parent=15 // pred_check_branch
        %123 = sbr.rel (%p121) target = $region20
      $region19: #{tcr_forward.1} parent=15 // pred_region
        %s124 = smul.u32 2, %s16
        %p125 = scmp.lt.s32.totalorder %s15, 1
        %s126 = scalar_select %p125, %s15, 1
        %p127 = scmp.lt.s32.totalorder %s124, 1
        %s128 = scalar_select %p127, %s124, 1
        %s129 = smul.addr %s126, 2
        %s130 = sadd.s32 %s128, %s129
        %s131 = smul.addr %s130, 2
        %s132 = scalar_lea.vmem %s0, %s131
        %s133 = smul.u32 2, %s16
      $region20: #{tcr_forward.1} parent=15 // pred_fallthru
        _
      // Predicated region
      $region21: #{tcr_forward.1} parent=15 // pred_check
        %p134 = pneg %p68
      $region22: #{tcr_forward.1} parent=15 // pred_check_branch
        %136 = sbr.rel (%p134) target = $region24
      $region23: #{tcr_forward.1} parent=15 // pred_region
        %p137 = scmp.lt.s32.totalorder %s15, 1
        %s138 = scalar_select %p137, %s15, 1
        %s139 = smul.addr %s138, 8
        %s140 = smul.addr %s139, 8
        %s141 = scalar_lea.vmem %s1, %s140
      $region24: #{tcr_forward.1} parent=15 // pred_fallthru
        _
    $region16: #{tcr_forward.1} parent=5 // pred_fallthru
      _
    %p142 = scmp.le.s32.totalorder 1, %s8
    %p143 = scmp.lt.s32.totalorder %s8, 3
    %p144 = pnand %p142, %p143
    %p145 = pneg %p144
    // Predicated region
    $region25: #{tcr_forward.1} parent=5 // pred_check
      _
    $region26: #{tcr_forward.1} parent=5 // pred_check_branch
      %147 = sbr.rel (%p144) target = $region28
    $region27: #{tcr_forward.1} parent=5 // pred_region
      %s148 = ssub.s32 %s8, 1
      %s149 = smul.u32 2, %s18
      %p150 = scmp.lt.s32.totalorder %s17, 1
      %s151 = scalar_select %p150, %s17, 1
      %p152 = scmp.lt.s32.totalorder %s149, 1
      %s153 = scalar_select %p152, %s149, 1
      %s154 = smul.addr %s151, 2
      %s155 = sadd.s32 %s153, %s154
      %s156 = smul.addr %s155, 2
      %s157 = scalar_lea.vmem %s0, %s156
      %p158 = pneg %p48
      %p159 = pneg %p45
      %p160 = scmp.lt.s32.totalorder %s17, 1
      %s161 = scalar_select %p160, %s17, 1
      %s162 = smul.addr %s161, 8
      %s163 = smul.addr %s162, 8
      %s164 = scalar_lea.vmem %s1, %s163
      %p165 = pneg %p74
      %p166 = pneg %p71
      %p167 = pneg %p102
      %p168 = pneg %p99
      %s169 = smul.u32 2, %s18
      %p170 = scmp.lt.s32.totalorder %s17, 1
      %s171 = scalar_select %p170, %s17, 1
      %p172 = scmp.lt.s32.totalorder %s169, 1
      %s173 = scalar_select %p172, %s169, 1
      %s174 = smul.addr %s171, 2
      %s175 = sadd.s32 %s173, %s174
      %s176 = smul.addr %s175, 4
      %s177 = scalar_lea.vmem %s2, %s176
      %s178 = smul.u32 2, %s18
      %p179 = scmp.lt.s32.totalorder %s17, 1
      %s180 = scalar_select %p179, %s17, 1
      %p181 = scmp.lt.s32.totalorder %s178, 1
      %s182 = scalar_select %p181, %s178, 1
      %s183 = smul.addr %s180, 2
      %s184 = sadd.s32 %s182, %s183
      %s185 = smul.addr %s184, 2
      %s186 = scalar_lea.vmem %s0, %s185
      %s187 = smul.u32 2, %s18
      %p188 = scmp.lt.s32.totalorder %s17, 1
      %s189 = scalar_select %p188, %s17, 1
      %s190 = smul.addr %s189, 8
      %s191 = smul.addr %s190, 8
      %s192 = scalar_lea.vmem %s1, %s191
      %s193 = smul.u32 2, %s18
      %p194 = scmp.lt.s32.totalorder %s17, 1
      %s195 = scalar_select %p194, %s17, 1
      %p196 = scmp.lt.s32.totalorder %s193, 1
      %s197 = scalar_select %p196, %s193, 1
      %s198 = smul.addr %s195, 2
      %s199 = sadd.s32 %s197, %s198
      %s200 = smul.addr %s199, 4
      %s201 = scalar_lea.vmem %s2, %s200
      %s202 = smul.u32 2, %s18
      %v203 = vld [vmem:[%s186] ss:$2 sm:$0x3]
      %s204 = scalar_lea.vmem %s186, 1
      %v205 = vld [vmem:[%s204] ss:$2 sm:$0x3]
      %v206 = vlaneseq
      %v207 = vshrl.u32 %v206, 7
      %v208 = vadd.s32 %v207, 8
      %v209 = vcvt.s32.f32 %v207
      %v210 = vcvt.s32.f32 %v208
      %v212 = vlaneseq
      %v213 = vshrl.u32 %v212, 7
      %v214 = vsub.s32 0, %v213
      %v215 = vrot.slane %v205, %v214
      %v216 = vlaneseq
      %v217 = vshrl.u32 %v216, 7
      %v218 = vsub.s32 1, %v217
      %v219 = vrot.slane %v205, %v218
      %v222 = vsub.f32 %v215, %v209
      %v223 = vsub.f32 %v219, %v209
      %v224 = vsub.f32 %v215, %v210
      %v225 = vsub.f32 %v219, %v210
      %v226 = vand.u32 2147483647, %v222
      %v227 = vand.u32 2147483647, %v223
      %v228 = vand.u32 2147483647, %v224
      %v229 = vand.u32 2147483647, %v225
      %v230 = vsub.f32 1.0, %v226
      %v231 = vsub.f32 1.0, %v227
      %v232 = vsub.f32 1.0, %v228
      %v233 = vsub.f32 1.0, %v229
      %v234 = vmax.f32 %v230, 0.0
      %v235 = vmax.f32 %v231, 0.0
      %v236 = vmax.f32 %v232, 0.0
      %v237 = vmax.f32 %v233, 0.0
      %v239 = vlaneseq
      %v240 = vshrl.u32 %v239, 7
      %v241 = vsub.s32 0, %v240
      %v242 = vrot.slane %v203, %v241
      %v243 = vlaneseq
      %v244 = vshrl.u32 %v243, 7
      %v245 = vsub.s32 1, %v244
      %v246 = vrot.slane %v203, %v245
      %v249 = vsub.f32 %v242, %v209
      %v250 = vsub.f32 %v246, %v209
      %v251 = vsub.f32 %v242, %v210
      %v252 = vsub.f32 %v246, %v210
      %v253 = vand.u32 2147483647, %v249
      %v254 = vand.u32 2147483647, %v250
      %v255 = vand.u32 2147483647, %v251
      %v256 = vand.u32 2147483647, %v252
      %v257 = vsub.f32 1.0, %v253
      %v258 = vsub.f32 1.0, %v254
      %v259 = vsub.f32 1.0, %v255
      %v260 = vsub.f32 1.0, %v256
      %v261 = vmax.f32 %v257, 0.0
      %v262 = vmax.f32 %v258, 0.0
      %v263 = vmax.f32 %v259, 0.0
      %v264 = vmax.f32 %v260, 0.0
      %v265 = vld [vmem:[%s192] sm:$0xff]
      %v266 = vld [vmem:[%s192 + $0x8] sm:$0xff]
      %v267 = vld [vmem:[%s192 + $0x10] sm:$0xff]
      %v268 = vld [vmem:[%s192 + $0x18] sm:$0xff]
      %v269 = vld [vmem:[%s192 + $0x20] sm:$0xff]
      %v270 = vld [vmem:[%s192 + $0x28] sm:$0xff]
      %v271 = vld [vmem:[%s192 + $0x30] sm:$0xff]
      %v272 = vld [vmem:[%s192 + $0x38] sm:$0xff]
      %vm273 = vcmask 130048
      %v275 = vsel %vm273, %v265, 0
      %v278 = vsel %vm273, %v266, 0
      %v281 = vsel %vm273, %v267, 0
      %v284 = vsel %vm273, %v268, 0
      %v287 = vsel %vm273, %v269, 0
      %v290 = vsel %vm273, %v270, 0
      %v293 = vsel %vm273, %v271, 0
      %v296 = vsel %vm273, %v272, 0
      %298 = vmatprep.subr.mxu0 0.0
      %299 = vmatpush1.msra.mxu0 0.0
      %300 = vmatprep.subr.mxu0 0.0
      %301 = vmatpush1.msra.mxu0 0.0
      %302 = vmatprep.subr.mxu0 0.0
      %303 = vmatpush1.msra.mxu0 0.0
      %304 = vmatprep.subr.mxu0 0.0
      %305 = vmatpush1.msra.mxu0 0.0
      %306 = vmatprep.subr.mxu0 0.0
      %307 = vmatpush1.msra.mxu0 0.0
      %308 = vmatprep.subr.mxu0 0.0
      %309 = vmatpush1.msra.mxu0 0.0
      %310 = vmatprep.subr.mxu0 0.0
      %311 = vmatpush1.msra.mxu0 0.0
      %312 = vmatprep.subr.mxu0 0.0
      %313 = vmatpush1.msra.mxu0 0.0
      %314 = vmatprep.subr.mxu0 0.0
      %315 = vmatpush1.msra.mxu0 0.0
      %316 = vmatprep.subr.mxu0 0.0
      %317 = vmatpush1.msra.mxu0 0.0
      %318 = vmatprep.subr.mxu0 0.0
      %319 = vmatpush1.msra.mxu0 0.0
      %320 = vmatprep.subr.mxu0 0.0
      %321 = vmatpush1.msra.mxu0 0.0
      %322 = vmatprep.subr.mxu0 0.0
      %323 = vmatpush1.msra.mxu0 0.0
      %324 = vmatprep.subr.mxu0 0.0
      %325 = vmatpush1.msra.mxu0 0.0
      %326 = vmatprep.subr.mxu0 %v237
      %327 = vmatpush1.msra.mxu0 %v236
      %328 = vmatprep.subr.mxu0 %v235
      %329 = vmatpush1.msra.mxu0 %v234
      %330 = vmatprep.subr.mxu0 0.0
      %331 = vmatpush2.msra.mxu0 0.0
      %332 = vmatprep.subr.mxu0 0.0
      %333 = vmatpush2.msra.mxu0 0.0
      %334 = vmatprep.subr.mxu0 0.0
      %335 = vmatpush2.msra.mxu0 0.0
      %336 = vmatprep.subr.mxu0 0.0
      %337 = vmatpush2.msra.mxu0 0.0
      %338 = vmatprep.subr.mxu0 0.0
      %339 = vmatpush2.msra.mxu0 0.0
      %340 = vmatprep.subr.mxu0 0.0
      %341 = vmatpush2.msra.mxu0 0.0
      %342 = vmatprep.subr.mxu0 0.0
      %343 = vmatpush2.msra.mxu0 0.0
      %344 = vmatprep.subr.mxu0 0.0
      %345 = vmatpush2.msra.mxu0 0.0
      %346 = vmatprep.subr.mxu0 0.0
      %347 = vmatpush2.msra.mxu0 0.0
      %348 = vmatprep.subr.mxu0 0.0
      %349 = vmatpush2.msra.mxu0 0.0
      %350 = vmatprep.subr.mxu0 0.0
      %351 = vmatpush2.msra.mxu0 0.0
      %352 = vmatprep.subr.mxu0 0.0
      %353 = vmatpush2.msra.mxu0 0.0
      %354 = vmatprep.subr.mxu0 0.0
      %355 = vmatpush2.msra.mxu0 0.0
      %356 = vmatprep.subr.mxu0 0.0
      %357 = vmatpush2.msra.mxu0 0.0
      %358 = vmatprep.subr.mxu0 0.0
      %359 = vmatpush2.msra.mxu0 0.0
      %360 = vmatprep.subr.mxu0 0.0
      %361 = vmatpush2.msra.mxu0 0.0
      %362 = vmatprep.mubr.f32.mxu0 0.0
      %363 = vmatmul.mubr.f32.gmra.mxu0 %v275
      %v364 = vpop.f32.mrf.mxu0
      %v365 = vadd.f32 0.0, %v364
      %v366 = vpop.f32.mrf.mxu0
      %v367 = vadd.f32 0.0, %v366
      %368 = vmatprep.mubr.f32.mxu0 0.0
      %369 = vmatmul.mubr.f32.gmra.mxu0 %v278
      %v370 = vpop.f32.mrf.mxu0
      %v371 = vadd.f32 0.0, %v370
      %v372 = vpop.f32.mrf.mxu0
      %v373 = vadd.f32 0.0, %v372
      %374 = vmatprep.mubr.f32.mxu0 0.0
      %375 = vmatmul.mubr.f32.gmra.mxu0 %v281
      %v376 = vpop.f32.mrf.mxu0
      %v377 = vadd.f32 0.0, %v376
      %v378 = vpop.f32.mrf.mxu0
      %v379 = vadd.f32 0.0, %v378
      %380 = vmatprep.mubr.f32.mxu0 0.0
      %381 = vmatmul.mubr.f32.gmra.mxu0 %v284
      %v382 = vpop.f32.mrf.mxu0
      %v383 = vadd.f32 0.0, %v382
      %v384 = vpop.f32.mrf.mxu0
      %v385 = vadd.f32 0.0, %v384
      %386 = vmatprep.mubr.f32.mxu0 0.0
      %387 = vmatmul.mubr.f32.gmra.mxu0 %v287
      %v388 = vpop.f32.mrf.mxu0
      %v389 = vadd.f32 0.0, %v388
      %v390 = vpop.f32.mrf.mxu0
      %v391 = vadd.f32 0.0, %v390
      %392 = vmatprep.mubr.f32.mxu0 0.0
      %393 = vmatmul.mubr.f32.gmra.mxu0 %v290
      %v394 = vpop.f32.mrf.mxu0
      %v395 = vadd.f32 0.0, %v394
      %v396 = vpop.f32.mrf.mxu0
      %v397 = vadd.f32 0.0, %v396
      %398 = vmatprep.mubr.f32.mxu0 0.0
      %399 = vmatmul.mubr.f32.gmra.mxu0 %v293
      %v400 = vpop.f32.mrf.mxu0
      %v401 = vadd.f32 0.0, %v400
      %v402 = vpop.f32.mrf.mxu0
      %v403 = vadd.f32 0.0, %v402
      %404 = vmatprep.mubr.f32.mxu0 0.0
      %405 = vmatmul.mubr.f32.gmra.mxu0 %v296
      %v406 = vpop.f32.mrf.mxu0
      %v407 = vadd.f32 0.0, %v406
      %v408 = vpop.f32.mrf.mxu0
      %v409 = vadd.f32 0.0, %v408
      %410 = vdwg.mxu0
      %v411 = vmul.f32 %v365, %v261
      %v412 = vmul.f32 %v367, %v262
      %v413 = vmul.f32 %v371, %v263
      %v414 = vmul.f32 %v373, %v264
      %v415 = vmul.f32 %v377, %v261
      %v416 = vmul.f32 %v379, %v262
      %v417 = vmul.f32 %v383, %v263
      %v418 = vmul.f32 %v385, %v264
      %v419 = vmul.f32 %v389, %v261
      %v420 = vmul.f32 %v391, %v262
      %v421 = vmul.f32 %v395, %v263
      %v422 = vmul.f32 %v397, %v264
      %v423 = vmul.f32 %v401, %v261
      %v424 = vmul.f32 %v403, %v262
      %v425 = vmul.f32 %v407, %v263
      %v426 = vmul.f32 %v409, %v264
      %v427 = vadd.f32 %v411, %v413
      %v428 = vrot.slane %v427, 4
      %v429 = vadd.f32 %v427, %v428
      %v430 = vrot.slane %v429, 2
      %v431 = vadd.f32 %v429, %v430
      %v432 = vrot.slane %v431, 1
      %v433 = vadd.f32 %v431, %v432
      %v434 = vadd.f32 %v412, %v414
      %v435 = vrot.slane %v434, 4
      %v436 = vadd.f32 %v434, %v435
      %v437 = vrot.slane %v436, 2
      %v438 = vadd.f32 %v436, %v437
      %v439 = vrot.slane %v438, 1
      %v440 = vadd.f32 %v438, %v439
      %v441 = vadd.f32 %v415, %v417
      %v442 = vrot.slane %v441, 4
      %v443 = vadd.f32 %v441, %v442
      %v444 = vrot.slane %v443, 2
      %v445 = vadd.f32 %v443, %v444
      %v446 = vrot.slane %v445, 1
      %v447 = vadd.f32 %v445, %v446
      %v448 = vadd.f32 %v416, %v418
      %v449 = vrot.slane %v448, 4
      %v450 = vadd.f32 %v448, %v449
      %v451 = vrot.slane %v450, 2
      %v452 = vadd.f32 %v450, %v451
      %v453 = vrot.slane %v452, 1
      %v454 = vadd.f32 %v452, %v453
      %v455 = vadd.f32 %v419, %v421
      %v456 = vrot.slane %v455, 4
      %v457 = vadd.f32 %v455, %v456
      %v458 = vrot.slane %v457, 2
      %v459 = vadd.f32 %v457, %v458
      %v460 = vrot.slane %v459, 1
      %v461 = vadd.f32 %v459, %v460
      %v462 = vadd.f32 %v420, %v422
      %v463 = vrot.slane %v462, 4
      %v464 = vadd.f32 %v462, %v463
      %v465 = vrot.slane %v464, 2
      %v466 = vadd.f32 %v464, %v465
      %v467 = vrot.slane %v466, 1
      %v468 = vadd.f32 %v466, %v467
      %v469 = vadd.f32 %v423, %v425
      %v470 = vrot.slane %v469, 4
      %v471 = vadd.f32 %v469, %v470
      %v472 = vrot.slane %v471, 2
      %v473 = vadd.f32 %v471, %v472
      %v474 = vrot.slane %v473, 1
      %v475 = vadd.f32 %v473, %v474
      %v476 = vadd.f32 %v424, %v426
      %v477 = vrot.slane %v476, 4
      %v478 = vadd.f32 %v476, %v477
      %v479 = vrot.slane %v478, 2
      %v480 = vadd.f32 %v478, %v479
      %v481 = vrot.slane %v480, 1
      %v482 = vadd.f32 %v480, %v481
      %v491 = vcombine.low %v433, %v440
      %v492 = vcombine.low %v447, %v454
      %v493 = vcombine.low %v461, %v468
      %v494 = vcombine.low %v475, %v482
      %v495 = vrot.slane %v492, 7
      %vm496 = vcmask 1041409
      %v497 = vsel %vm496, %v495, %v491
      %vm498 = vcmask 1045509
      %v499 = vsel %vm498, %v495, %v497
      %v500 = vrot.slane %v493, 6
      %vm501 = vcmask 1042434
      %v502 = vsel %vm501, %v500, %v499
      %vm503 = vcmask 1046534
      %v504 = vsel %vm503, %v500, %v502
      %v505 = vrot.slane %v494, 5
      %vm506 = vcmask 1043459
      %v507 = vsel %vm506, %v505, %v504
      %vm508 = vcmask 1047559
      %v509 = vsel %vm508, %v505, %v507
      %511 = vst [vmem:[%s201] sm:$0xff] %v509
      %s512 = smul.u32 2, %s18
      %p513 = scmp.lt.s32.totalorder %s17, 1
      %s514 = scalar_select %p513, %s17, 1
      %p515 = scmp.lt.s32.totalorder %s512, 1
      %s516 = scalar_select %p515, %s512, 1
      %s517 = smul.addr %s514, 2
      %s518 = sadd.s32 %s516, %s517
      %s519 = smul.addr %s518, 4
      %s520 = scalar_lea.vmem %s2, %s519
      // Predicated region
      $region29: #{tcr_forward.1} parent=27 // pred_check
        %p521 = pneg %p99
      $region30: #{tcr_forward.1} parent=27 // pred_check_branch
        %523 = sbr.rel (%p521) target = $region32
      $region31: #{tcr_forward.1} parent=27 // pred_region
        %s524 = smul.u32 2, %s18
      $region32: #{tcr_forward.1} parent=27 // pred_fallthru
        _
    $region28: #{tcr_forward.1} parent=5 // pred_fallthru
      _
    %p525 = scmp.le.s32.totalorder 2, %s8
    // Predicated region
    $region33: #{tcr_forward.1} parent=5 // pred_check
      %p526 = pneg %p525
    $region34: #{tcr_forward.1} parent=5 // pred_check_branch
      %528 = sbr.rel (%p526) target = $region36
    $region35: #{tcr_forward.1} parent=5 // pred_region
      %s529 = ssub.s32 %s8, 2
      // Predicated region
      $region37: #{tcr_forward.1} parent=35 // pred_check
        %p530 = pneg %p105
      $region38: #{tcr_forward.1} parent=35 // pred_check_branch
        %532 = sbr.rel (%p530) target = $region40
      $region39: #{tcr_forward.1} parent=35 // pred_region
        %s533 = smul.u32 2, %s20
        %p534 = scmp.lt.s32.totalorder %s19, 1
        %s535 = scalar_select %p534, %s19, 1
        %p536 = scmp.lt.s32.totalorder %s533, 1
        %s537 = scalar_select %p536, %s533, 1
        %s538 = smul.addr %s535, 2
        %s539 = sadd.s32 %s537, %s538
        %s540 = smul.addr %s539, 4
        %s541 = scalar_lea.vmem %s2, %s540
      $region40: #{tcr_forward.1} parent=35 // pred_fallthru
        _
    $region36: #{tcr_forward.1} parent=5 // pred_fallthru
      _
  $region6: #{tcr_forward.1} parent=0 // loop_footer
    %s12 = sadd.s32 1, %s8
  $region7: #{tcr_forward.1} parent=0 // loop_footer_branch
    %7 = sbr.rel target = $region3
  $region8: #{tcr_forward.1} parent=0 // loop_exit
    _

</llo_original>
